<compile_context>
chip_gen: v5e
topology: v5e:2x2
jax: 0.10.0
libtpu: 0.0.40
codegen_flags: <defaults>
</compile_context>

<pallas_src>
import functools

import jax
import jax.numpy as jnp
from jax.experimental import pallas as pl
from jax.experimental.pallas import tpu as pltpu


def _layernorm_kernel(x_ref, g_ref, b_ref, o_ref, *, eps):
    """LayerNorm over channels on one (1, C, S, L) tile (reduce over axis 1)."""
    # Math kept in f32 (v5e VPU has no bf16 ALUs; also matches torch numerics).
    x = x_ref[...].astype(jnp.float32)                # (1, C, S, L)
    mean = jnp.mean(x, axis=1, keepdims=True)         # (1, 1, S, L)
    xc = x - mean                                     # reused for var & output
    var = jnp.mean(xc * xc, axis=1, keepdims=True)    # unbiased=False
    inv = jax.lax.rsqrt(var + eps)                    # EUP rsqrt (free slot)
    g = g_ref[...].astype(jnp.float32)                # (1, C, 1, 1)
    b = b_ref[...].astype(jnp.float32)                # (1, C, 1, 1)
    o_ref[...] = (xc * inv * g + b).astype(o_ref.dtype)


def _pick_spatial_tile(s_rows, c, lanes, itemsize, target_block_bytes):
    """Largest divisor of s_rows whose x block fits the byte budget and is
    legal under the (8, 128) tiling rule (multiple of 8, or the full dim)."""
    bytes_per_row = c * lanes * itemsize
    max_rows = max(1, target_block_bytes // bytes_per_row)
    if s_rows <= max_rows:
        return s_rows                      # full dim -> always legal
    best = None
    for d in range(1, s_rows + 1):
        if s_rows % d == 0 and d <= max_rows and d % 8 == 0:
            best = d
    return best if best is not None else s_rows


def layer_norm_nchw(x, g, b, eps=1e-5, block_bytes=1 << 20):
    """Channel-wise LayerNorm matching the PyTorch module.

    x: (N, C, H, W); g, b: (1, C, 1, 1).
    """
    N, C, H, W = x.shape
    HW = H * W
    if HW % 128 == 0:
        lanes = 128
        s_rows = HW // 128
    else:
        # Fallback: keep the whole flattened spatial extent as the lane dim
        # (full-dim exemption from the (8,128) rule).
        lanes = HW
        s_rows = 1

    xr = x.reshape(N, C, s_rows, lanes)        # free reshape, lane-dense minor
    g4 = g.reshape(1, C, 1, 1)
    b4 = b.reshape(1, C, 1, 1)

    s_tile = _pick_spatial_tile(s_rows, C, lanes, xr.dtype.itemsize, block_bytes)
    grid = (N, s_rows // s_tile)

    kernel = functools.partial(_layernorm_kernel, eps=eps)
    out = pl.pallas_call(
        kernel,
        out_shape=jax.ShapeDtypeStruct((N, C, s_rows, lanes), x.dtype),
        grid_spec=pltpu.PrefetchScalarGridSpec(
            num_scalar_prefetch=0,
            grid=grid,
            in_specs=[
                pl.BlockSpec((1, C, s_tile, lanes), lambda n, s: (n, 0, s, 0)),
                pl.BlockSpec((1, C, 1, 1), lambda n, s: (0, 0, 0, 0)),
                pl.BlockSpec((1, C, 1, 1), lambda n, s: (0, 0, 0, 0)),
            ],
            out_specs=pl.BlockSpec((1, C, s_tile, lanes),
                                   lambda n, s: (n, 0, s, 0)),
        ),
        # Both axes independent -> shards across v7x's two TensorCores even for
        # small N.  Blocks are sized under every generation's default scoped
        # VMEM, so vmem_limit_bytes is left at its default.
        compiler_params=pltpu.CompilerParams(
            dimension_semantics=("parallel", "parallel"),
        ),
    )(xr, g4, b4)
    return out.reshape(N, C, H, W)


def pre_norm(x, g, b, fn=lambda y: y, eps=1e-5, block_bytes=1 << 20):
    """PreNorm.forward: fn(LayerNorm(x))."""
    # TODO(synk): `fn` is an arbitrary user sub-module in the PyTorch spec; it
    # is applied here as a plain JAX callable (identity by default), not fused
    # into the norm kernel.
    return fn(layer_norm_nchw(x, g, b, eps=eps, block_bytes=block_bytes))


def _reference(x, g, b, eps=1e-5):
    xf = x.astype(jnp.float32)
    mean = jnp.mean(xf, axis=1, keepdims=True)
    var = jnp.mean((xf - mean) ** 2, axis=1, keepdims=True)
    return ((xf - mean) / jnp.sqrt(var + eps) * g + b).astype(x.dtype)


if __name__ == "__main__":
    key = jax.random.PRNGKey(0)
    k1, k2, k3, k4, k5 = jax.random.split(key, 5)

    # Primary shape from the module spec: batch=2, channels=4, spatial=16x16.
    N, C, H, W = 2, 4, 16, 16
    x = jax.random.normal(k1, (N, C, H, W), dtype=jnp.float32)

    # nn.Parameter init (ones / zeros) plus a perturbed pair to exercise the
    # affine path.
    g_init = jnp.ones((1, C, 1, 1), dtype=jnp.float32)
    b_init = jnp.zeros((1, C, 1, 1), dtype=jnp.float32)
    g_rand = g_init + 0.1 * jax.random.normal(k2, (1, C, 1, 1), dtype=jnp.float32)
    b_rand = b_init + 0.1 * jax.random.normal(k3, (1, C, 1, 1), dtype=jnp.float32)

    cases = [
        # (x, g, b, block_bytes)
        (x, g_init, b_init, 1 << 20),
        (x, g_rand, b_rand, 1 << 20),
        # H*W not a multiple of 128 -> full-dim lane fallback path.
        (jax.random.normal(k4, (2, 4, 5, 6), dtype=jnp.float32),
         jnp.ones((1, 4, 1, 1), jnp.float32),
         jnp.zeros((1, 4, 1, 1), jnp.float32),
         1 << 20),
        # Small block budget -> forces the spatially tiled multi-step grid.
        (jax.random.normal(k5, (2, 8, 32, 128), dtype=jnp.float32),
         jnp.ones((1, 8, 1, 1), jnp.float32),
         jnp.zeros((1, 8, 1, 1), jnp.float32),
         64 * 1024),
    ]

    for xi, gi, bi, bb in cases:
        out = jax.block_until_ready(pre_norm(xi, gi, bi, block_bytes=bb))
        ref = _reference(xi, gi, bi)
        assert out.shape == xi.shape
        assert jnp.allclose(out, ref, atol=1e-5, rtol=1e-5), (
            "max abs err", float(jnp.max(jnp.abs(out - ref))))

    print("KERNEL_OK")
</pallas_src>

<mosaic_0001>
module attributes {stable_mosaic.version = 11 : i64} {
  func.func @_layernorm_kernel(%arg0: i32, %arg1: i32, %arg2: memref<1x4x2x128xf32, #tpu.memory_space<vmem>>, %arg3: memref<1x4x1x1xf32, #tpu.memory_space<vmem>>, %arg4: memref<1x4x1x1xf32, #tpu.memory_space<vmem>>, %arg5: memref<1x4x2x128xf32, #tpu.memory_space<vmem>>) attributes {dimension_semantics = [#tpu.dimension_semantics<parallel>, #tpu.dimension_semantics<parallel>], iteration_bounds = array<i64: 2, 1>, scalar_prefetch = 0 : i64, scratch_operands = 0 : i64, tpu.core_type = #tpu.core_type<tc>, window_params = [{transform_indices = @transform_0, window_bounds = array<i64: 1, 4, 2, 128>}, {pipeline_mode = #tpu.pipeline_mode<synchronous>, transform_indices = @transform_1, window_bounds = array<i64: 1, 4, 1, 1>}, {pipeline_mode = #tpu.pipeline_mode<synchronous>, transform_indices = @transform_2, window_bounds = array<i64: 1, 4, 1, 1>}, {transform_indices = @transform_3, window_bounds = array<i64: 1, 4, 2, 128>}]} {
    %c0 = arith.constant 0 : index
    %c0_0 = arith.constant 0 : index
    %c0_1 = arith.constant 0 : index
    %c0_2 = arith.constant 0 : index
    %0 = vector.load %arg2[%c0, %c0_0, %c0_1, %c0_2] : memref<1x4x2x128xf32, #tpu.memory_space<vmem>>, vector<1x4x2x128xf32>
    %cst = arith.constant dense<0.000000e+00> : vector<1x2x128xf32>
    %1 = vector.multi_reduction <add>, %0, %cst [1] : vector<1x4x2x128xf32> to vector<1x2x128xf32>
    %2 = vector.shape_cast %1 : vector<1x2x128xf32> to vector<1x1x2x128xf32>
    %cst_3 = arith.constant 4.000000e+00 : f32
    %3 = vector.broadcast %cst_3 : f32 to vector<1x1x2x128xf32>
    %4 = arith.divf %2, %3 : vector<1x1x2x128xf32>
    %5 = vector.broadcast %4 : vector<1x1x2x128xf32> to vector<1x4x2x128xf32>
    %6 = arith.subf %0, %5 : vector<1x4x2x128xf32>
    %7 = arith.mulf %6, %6 : vector<1x4x2x128xf32>
    %cst_4 = arith.constant dense<0.000000e+00> : vector<1x2x128xf32>
    %8 = vector.multi_reduction <add>, %7, %cst_4 [1] : vector<1x4x2x128xf32> to vector<1x2x128xf32>
    %9 = vector.shape_cast %8 : vector<1x2x128xf32> to vector<1x1x2x128xf32>
    %cst_5 = arith.constant 4.000000e+00 : f32
    %10 = vector.broadcast %cst_5 : f32 to vector<1x1x2x128xf32>
    %11 = arith.divf %9, %10 : vector<1x1x2x128xf32>
    %cst_6 = arith.constant 9.99999974E-6 : f32
    %12 = vector.broadcast %cst_6 : f32 to vector<1x1x2x128xf32>
    %13 = arith.addf %11, %12 : vector<1x1x2x128xf32>
    %14 = math.rsqrt %13 : vector<1x1x2x128xf32>
    %c0_7 = arith.constant 0 : index
    %c0_8 = arith.constant 0 : index
    %c0_9 = arith.constant 0 : index
    %c0_10 = arith.constant 0 : index
    %15 = vector.load %arg3[%c0_7, %c0_8, %c0_9, %c0_10] : memref<1x4x1x1xf32, #tpu.memory_space<vmem>>, vector<1x4x1x1xf32>
    %c0_11 = arith.constant 0 : index
    %c0_12 = arith.constant 0 : index
    %c0_13 = arith.constant 0 : index
    %c0_14 = arith.constant 0 : index
    %16 = vector.load %arg4[%c0_11, %c0_12, %c0_13, %c0_14] : memref<1x4x1x1xf32, #tpu.memory_space<vmem>>, vector<1x4x1x1xf32>
    %17 = vector.broadcast %14 : vector<1x1x2x128xf32> to vector<1x4x2x128xf32>
    %18 = arith.mulf %6, %17 : vector<1x4x2x128xf32>
    %19 = vector.broadcast %15 : vector<1x4x1x1xf32> to vector<1x4x2x128xf32>
    %20 = arith.mulf %18, %19 : vector<1x4x2x128xf32>
    %21 = vector.broadcast %16 : vector<1x4x1x1xf32> to vector<1x4x2x128xf32>
    %22 = arith.addf %20, %21 : vector<1x4x2x128xf32>
    %c0_15 = arith.constant 0 : index
    %c0_16 = arith.constant 0 : index
    %c0_17 = arith.constant 0 : index
    %c0_18 = arith.constant 0 : index
    %23 = vector.load %arg5[%c0_15, %c0_16, %c0_17, %c0_18] : memref<1x4x2x128xf32, #tpu.memory_space<vmem>>, vector<1x4x2x128xf32>
    tpu.vector_store %arg5[%c0_15, %c0_16, %c0_17, %c0_18], %22 {strides = array<i32>} : memref<1x4x2x128xf32, #tpu.memory_space<vmem>>, vector<1x4x2x128xf32>,
    return
  }
  func.func @transform_0(%arg0: i32, %arg1: i32) -> (i32, i32, i32, i32) {
    %c0_i32 = arith.constant 0 : i32
    %c0_i32_0 = arith.constant 0 : i32
    %c0_i32_1 = arith.constant 0 : i32
    return %arg0, %c0_i32, %arg1, %c0_i32_0 : i32, i32, i32, i32
  }
  func.func @transform_1(%arg0: i32, %arg1: i32) -> (i32, i32, i32, i32) {
    %c0_i32 = arith.constant 0 : i32
    %c0_i32_0 = arith.constant 0 : i32
    %c0_i32_1 = arith.constant 0 : i32
    %c0_i32_2 = arith.constant 0 : i32
    %c0_i32_3 = arith.constant 0 : i32
    return %c0_i32, %c0_i32_0, %c0_i32_1, %c0_i32_2 : i32, i32, i32, i32
  }
  func.func @transform_2(%arg0: i32, %arg1: i32) -> (i32, i32, i32, i32) {
    %c0_i32 = arith.constant 0 : i32
    %c0_i32_0 = arith.constant 0 : i32
    %c0_i32_1 = arith.constant 0 : i32
    %c0_i32_2 = arith.constant 0 : i32
    %c0_i32_3 = arith.constant 0 : i32
    return %c0_i32, %c0_i32_0, %c0_i32_1, %c0_i32_2 : i32, i32, i32, i32
  }
  func.func @transform_3(%arg0: i32, %arg1: i32) -> (i32, i32, i32, i32) {
    %c0_i32 = arith.constant 0 : i32
    %c0_i32_0 = arith.constant 0 : i32
    %c0_i32_1 = arith.constant 0 : i32
    return %arg0, %c0_i32, %arg1, %c0_i32_0 : i32, i32, i32, i32
  }
}

</mosaic_0001>

<llo_original>
// kernel: tpu_custom_call.1
$region0: #{tpu_custom_call.1}
  #allocation0 [shape = 'u32[]', space=smem, size = 0x4, offset = 0x4, fixed_abs, tag = 'smem constant byte address 0x4 - core index']
  #allocation1 [shape = 'u32[72,128]{1,0:T(1,128)}', space=vmem, size = 0x9000, scoped, tag = 'internal scratch']
  %s0 = inlined_call_operand.hbm [shape: f32[2,4,2,128], index: 0, kind: input, shape index: {}]
  %s1 = inlined_call_operand.vmem [shape: f32[1,4,1,1], index: 1, kind: input, shape index: {}]
  %s2 = inlined_call_operand.vmem [shape: f32[1,4,1,1], index: 2, kind: input, shape index: {}]
  %s3 = inlined_call_operand.hbm [shape: f32[2,4,2,128], index: 3, kind: output, shape index: {}]
  %s4 = sld [smem:[#allocation0]]
  $region49: #{tpu_custom_call.1} parent=0
    _
  %s6 = ssub.s32 1, %s4
  %s7 = scalar_select 0, %s6, %s4
  $region1: #{tpu_custom_call.1} parent=0
    #allocation2 [shape = 'u8[8192]{0}', space=vmem, size = 0x2000, scoped, tag = 'input window, operand 0']
    #allocation3 [shape = 's32[2]{0}', space=sflag, size = 0x8, scoped, tag = 'scoped memory for tpu_custom_call.1']
    #allocation4 [shape = 's32[2]{0}', space=sflag, size = 0x8, scoped, tag = 'scoped memory for tpu_custom_call.1']
    #allocation5 [shape = 'u8[8192]{0}', space=vmem, size = 0x2000, scoped, tag = 'output window, operand 0']
    %8 = vsyncpa [#allocation3], 0
    %s9 = scalar_lea.sflag [#allocation3], 1
    %10 = vsyncpa %s9, 0
    %11 = vsyncpa [#allocation4], 0
    %s12 = scalar_lea.sflag [#allocation4], 1
    %13 = vsyncpa %s12, 0
    loop: start=0, step=1, limit=4
    $region2: #{tpu_custom_call.1} parent=1 // loop_pre_header
      _
    $region3: #{tpu_custom_call.1} parent=1 // loop_header
      %s15 = sphi 0, %s19
      %p16 = scmp.ge.s32.totalorder %s15, 4
      %s22 = sphi 0, %s34
      %s23 = sphi 0, %s30
      %s24 = sphi 0, %s22
      %s25 = sphi 0, %s23
      %s26 = sphi 0, %s24
      %s27 = sphi 0, %s25
      %s39 = sphi 0, %s41
      %s42 = sphi 0, %s39
      %s43 = sphi 0, %s42
      %s59 = sphi 0, %s43
      %s63 = sphi 0, %s63
      %s65 = sphi 0, %s63
      %s66 = sphi 0, %s65
      %s80 = sphi 0, %s66
      %s84 = sphi 0, %s84
      %s86 = sphi 0, %s84
      %s87 = sphi 0, %s86
      %s101 = sphi 0, %s87
      %s109 = sphi 0, %s111
      %s112 = sphi 0, %s109
      %s113 = sphi 0, %s112
      %s129 = sphi 0, %s113
    $region4: #{tpu_custom_call.1} parent=1 // loop_header_branch
      %18 = sbr.rel (%p16) target = $region8
    $region5: #{tpu_custom_call.1} parent=1 // loop_body
      %s20 = ssub.s32 %s15, 1
      %s21 = ssub.s32 %s15, 2
      %s28 = sadd.s32 1, %s23
      %p29 = scmp.ge.s32.totalorder %s28, 1
      %s30 = scalar_select %p29, 0, %s28
      %s31 = sadd.s32 1, %s22
      %s32 = scalar_select %p29, %s31, %s22
      %p33 = scmp.ge.s32.totalorder %s32, 2
      %s34 = scalar_select %p33, 0, %s32
      %s35 = ssub.s32 %s22, %s34
      %s36 = ssub.s32 %s23, %s30
      %s37 = sor.u32 %s35, %s36
      %p38 = scmp.eq.s32.totalorder %s37, 0
      %s40 = sadd.s32 %s39, 1
      %s41 = scalar_select %p38, %s39, %s40
      %p44 = pneg %p38
      %p45 = scmp.eq.s32.totalorder %s15, 1
      %p46 = por %p44, %p45
      %p47 = scmp.ne.s32.totalorder %s39, %s42
      %p48 = scmp.eq.s32.totalorder %s15, 0
      %p49 = por %p47, %p48
      %p50 = scmp.ne.s32.totalorder %s39, %s42
      %p51 = scmp.eq.s32.totalorder %s20, 1
      %p52 = por %p50, %p51
      %p53 = scmp.ne.s32.totalorder %s42, %s43
      %p54 = scmp.eq.s32.totalorder %s20, 0
      %p55 = por %p53, %p54
      %p56 = scmp.ne.s32.totalorder %s42, %s43
      %p57 = scmp.eq.s32.totalorder %s21, 1
      %p58 = por %p56, %p57
      %p60 = scmp.ne.s32.totalorder %s43, %s59
      %p61 = scmp.eq.s32.totalorder %s21, 0
      %p62 = por %p60, %p61
      %s64 = sadd.s32 %s63, 1
      %p67 = scmp.eq.s32.totalorder %s15, 1
      %p68 = scmp.ne.s32.totalorder %s63, %s65
      %p69 = scmp.eq.s32.totalorder %s15, 0
      %p70 = por %p68, %p69
      %p71 = scmp.ne.s32.totalorder %s63, %s65
      %p72 = scmp.eq.s32.totalorder %s20, 1
      %p73 = por %p71, %p72
      %p74 = scmp.ne.s32.totalorder %s65, %s66
      %p75 = scmp.eq.s32.totalorder %s20, 0
      %p76 = por %p74, %p75
      %p77 = scmp.ne.s32.totalorder %s65, %s66
      %p78 = scmp.eq.s32.totalorder %s21, 1
      %p79 = por %p77, %p78
      %p81 = scmp.ne.s32.totalorder %s66, %s80
      %p82 = scmp.eq.s32.totalorder %s21, 0
      %p83 = por %p81, %p82
      %s85 = sadd.s32 %s84, 1
      %p88 = scmp.eq.s32.totalorder %s15, 1
      %p89 = scmp.ne.s32.totalorder %s84, %s86
      %p90 = scmp.eq.s32.totalorder %s15, 0
      %p91 = por %p89, %p90
      %p92 = scmp.ne.s32.totalorder %s84, %s86
      %p93 = scmp.eq.s32.totalorder %s20, 1
      %p94 = por %p92, %p93
      %p95 = scmp.ne.s32.totalorder %s86, %s87
      %p96 = scmp.eq.s32.totalorder %s20, 0
      %p97 = por %p95, %p96
      %p98 = scmp.ne.s32.totalorder %s86, %s87
      %p99 = scmp.eq.s32.totalorder %s21, 1
      %p100 = por %p98, %p99
      %p102 = scmp.ne.s32.totalorder %s87, %s101
      %p103 = scmp.eq.s32.totalorder %s21, 0
      %p104 = por %p102, %p103
      %s105 = ssub.s32 %s22, %s34
      %s106 = ssub.s32 %s23, %s30
      %s107 = sor.u32 %s105, %s106
      %p108 = scmp.eq.s32.totalorder %s107, 0
      %s110 = sadd.s32 %s109, 1
      %s111 = scalar_select %p108, %s109, %s110
      %p114 = pneg %p108
      %p115 = scmp.eq.s32.totalorder %s15, 1
      %p116 = por %p114, %p115
      %p117 = scmp.ne.s32.totalorder %s109, %s112
      %p118 = scmp.eq.s32.totalorder %s15, 0
      %p119 = por %p117, %p118
      %p120 = scmp.ne.s32.totalorder %s109, %s112
      %p121 = scmp.eq.s32.totalorder %s20, 1
      %p122 = por %p120, %p121
      %p123 = scmp.ne.s32.totalorder %s112, %s113
      %p124 = scmp.eq.s32.totalorder %s20, 0
      %p125 = por %p123, %p124
      %p126 = scmp.ne.s32.totalorder %s112, %s113
      %p127 = scmp.eq.s32.totalorder %s21, 1
      %p128 = por %p126, %p127
      %p130 = scmp.ne.s32.totalorder %s113, %s129
      %p131 = scmp.eq.s32.totalorder %s21, 0
      %p132 = por %p130, %p131
      %p133 = scmp.le.s32.totalorder 1, %s15
      %p134 = scmp.lt.s32.totalorder %s15, 3
      %p135 = pnand %p133, %p134
      %p136 = pneg %p135
      // Predicated region
      $region9: #{tpu_custom_call.1} parent=5 // pred_check
        _
      $region10: #{tpu_custom_call.1} parent=5 // pred_check_branch
        %138 = sbr.rel (%p135) target = $region12
      $region11: #{tpu_custom_call.1} parent=5 // pred_region
        %s139 = ssub.s32 %s15, 1
        // Predicated region
        $region13: #{tpu_custom_call.1} parent=11 // pred_check
          %p140 = pneg %p76
        $region14: #{tpu_custom_call.1} parent=11 // pred_check_branch
          %142 = sbr.rel (%p140) target = $region16
        $region15: #{tpu_custom_call.1} parent=11 // pred_region
          _
        $region16: #{tpu_custom_call.1} parent=11 // pred_fallthru
          _
        // Predicated region
        $region17: #{tpu_custom_call.1} parent=11 // pred_check
          %p143 = pneg %p97
        $region18: #{tpu_custom_call.1} parent=11 // pred_check_branch
          %145 = sbr.rel (%p143) target = $region20
        $region19: #{tpu_custom_call.1} parent=11 // pred_region
          _
        $region20: #{tpu_custom_call.1} parent=11 // pred_fallthru
          _
      $region12: #{tpu_custom_call.1} parent=5 // pred_fallthru
        _
      %p146 = scmp.lt.s32.totalorder %s15, 2
      // Predicated region
      $region21: #{tpu_custom_call.1} parent=5 // pred_check
        %p147 = pneg %p146
      $region22: #{tpu_custom_call.1} parent=5 // pred_check_branch
        %149 = sbr.rel (%p147) target = $region24
      $region23: #{tpu_custom_call.1} parent=5 // pred_region
        // Predicated region
        $region25: #{tpu_custom_call.1} parent=23 // pred_check
          %p150 = pneg %p49
        $region26: #{tpu_custom_call.1} parent=23 // pred_check_branch
          %152 = sbr.rel (%p150) target = $region28
        $region27: #{tpu_custom_call.1} parent=23 // pred_region
          %s153 = sand.u32 %s39, 1
          %s154 = scalar_lea.sflag [#allocation3], %s153
          %s155 = sand.u32 %s39, 1
          %s156 = smul.addr %s155, 8
          %s157 = scalar_lea.vmem [#allocation2], %s156
          %159 = vsyncadd %s154, 0
          %s160 = smul.addr %s22, 4
          %s161 = sadd.s32 %s23, %s160
          %s162 = smul.addr %s161, 2
          %s163 = scalar_lea.hbm %s0, %s162
          %s164 = sshll.u32 %s163, 4
          %s165 = int_to_ptr.hbm [resolvable:$true] %s164
          %s166 = sshll.u32 %s157, 4
          %s167 = int_to_ptr.vmem [resolvable:$true] %s166
          %172 = dma.hbm_to_vmem [thread:$0]  %s165, 128, %s167, %s154, 32, 32, 2
        $region28: #{tpu_custom_call.1} parent=23 // pred_fallthru
          _
      $region24: #{tpu_custom_call.1} parent=5 // pred_fallthru
        _
      %p173 = scmp.le.s32.totalorder 1, %s15
      %p174 = scmp.lt.s32.totalorder %s15, 3
      %p175 = pnand %p173, %p174
      %p176 = pneg %p175
      // Predicated region
      $region29: #{tpu_custom_call.1} parent=5 // pred_check
        _
      $region30: #{tpu_custom_call.1} parent=5 // pred_check_branch
        %178 = sbr.rel (%p175) target = $region32
      $region31: #{tpu_custom_call.1} parent=5 // pred_region
        %s179 = ssub.s32 %s15, 1
        %s180 = sand.u32 %s42, 1
        %s181 = scalar_lea.sflag [#allocation3], %s180
        %s182 = sand.u32 %s42, 1
        %s183 = smul.addr %s182, 8
        %s184 = scalar_lea.vmem [#allocation2], %s183
        // Predicated region
        $region33: #{tpu_custom_call.1} parent=31 // pred_check
          %p185 = pneg %p55
        $region34: #{tpu_custom_call.1} parent=31 // pred_check_branch
          %187 = sbr.rel (%p185) target = $region36
        $region35: #{tpu_custom_call.1} parent=31 // pred_region
          %189 = dma.done %s181, 128
        $region36: #{tpu_custom_call.1} parent=31 // pred_fallthru
          _
        %s190 = sand.u32 %s42, 1
        %s191 = scalar_lea.sflag [#allocation3], %s190
        %s192 = sand.u32 %s42, 1
        %s193 = smul.addr %s192, 8
        %s194 = scalar_lea.vmem [#allocation2], %s193
        %p195 = pneg %p55
        %p196 = pneg %p52
        %p197 = pneg %p76
        %p198 = pneg %p73
        %p199 = pneg %p97
        %p200 = pneg %p94
        %p201 = pneg %p125
        %p202 = pneg %p122
        %s203 = sand.u32 %s112, 1
        %s204 = scalar_lea.sflag [#allocation4], %s203
        %s205 = sand.u32 %s112, 1
        %s206 = smul.addr %s205, 8
        %s207 = scalar_lea.vmem [#allocation5], %s206
        %v208 = vld [vmem:[%s184] sm:$0x3]
        %v209 = vld [vmem:[%s184 + $0x2] sm:$0x3]
        %v210 = vld [vmem:[%s184 + $0x4] sm:$0x3]
        %v211 = vld [vmem:[%s184 + $0x6] sm:$0x3]
        %vm212 = vcmask 1041408
        %v213 = vsel %vm212, %v208, 0.0
        %v214 = vsel %vm212, %v209, 0.0
        %v215 = vadd.f32 %v213, %v214
        %v216 = vsel %vm212, %v210, 0.0
        %v217 = vadd.f32 %v215, %v216
        %v218 = vsel %vm212, %v211, 0.0
        %v219 = vadd.f32 %v217, %v218
        %v220 = vrcp.pop 4.0
        %v221 = vmul.f32 4.0, %v220
        %v222 = vsub.f32 1.0, %v221
        %v223 = vmul.f32 %v220, %v222
        %v224 = vadd.f32 %v220, %v223
        %vm225 = vweird.f32 %v220
        %v226 = vsel %vm225, %v220, %v224
        %v227 = vmul.f32 %v219, %v226
        %v228 = vsub.f32 %v208, %v227
        %v229 = vsub.f32 %v209, %v227
        %v230 = vsub.f32 %v210, %v227
        %v231 = vsub.f32 %v211, %v227
        %v232 = vmul.f32 %v228, %v228
        %v233 = vmul.f32 %v229, %v229
        %v234 = vmul.f32 %v230, %v230
        %v235 = vmul.f32 %v231, %v231
        %v236 = vsel %vm212, %v232, 0.0
        %v237 = vsel %vm212, %v233, 0.0
        %v238 = vadd.f32 %v236, %v237
        %v239 = vsel %vm212, %v234, 0.0
        %v240 = vadd.f32 %v238, %v239
        %v241 = vsel %vm212, %v235, 0.0
        %v242 = vadd.f32 %v240, %v241
        %v243 = vmul.f32 %v242, %v226
        %v244 = vadd.f32 %v243, 1e-05
        %v245 = vrsqrt.pop %v244
        %v246 = vmul.f32 %v245, %v244
        %v247 = vmul.f32 %v246, %v245
        %v248 = vmul.f32 0.5, %v247
        %v249 = vsub.f32 1.5, %v248
        %v250 = vmul.f32 %v245, %v249
        %vm251 = vweird.f32 %v244
        %vm252 = vweird.f32 %v245
        %vm253 = vmor %vm251, %vm252
        %v254 = vsel %vm253, %v245, %v250
        %v255 = vld [vmem:[%s1] sm:$0x1]
        %v256 = vld [vmem:[%s1 + $0x1] sm:$0x1]
        %v257 = vld [vmem:[%s1 + $0x2] sm:$0x1]
        %v258 = vld [vmem:[%s1 + $0x3] sm:$0x1]
        %v259 = vld [vmem:[%s2] sm:$0x1]
        %v260 = vld [vmem:[%s2 + $0x1] sm:$0x1]
        %v261 = vld [vmem:[%s2 + $0x2] sm:$0x1]
        %v262 = vld [vmem:[%s2 + $0x3] sm:$0x1]
        %v263 = vmul.f32 %v228, %v254
        %v264 = vmul.f32 %v229, %v254
        %v265 = vmul.f32 %v230, %v254
        %v266 = vmul.f32 %v231, %v254
        %v271 = vperm.slane %v255, 0
        %v272 = vperm.slane %v256, 0
        %v273 = vperm.slane %v257, 0
        %v274 = vperm.slane %v258, 0
        %275 = vset.pattern.permute.xlu0 0
        %276 = vperm.xlu0 %275, %v271
        %v277 = vpop.permute.xlu0 %276
        %279 = vset.pattern.permute.xlu0 0
        %280 = vperm.xlu0 %279, %v272
        %v281 = vpop.permute.xlu0 %280
        %283 = vset.pattern.permute.xlu0 0
        %284 = vperm.xlu0 %283, %v273
        %v285 = vpop.permute.xlu0 %284
        %287 = vset.pattern.permute.xlu0 0
        %288 = vperm.xlu0 %287, %v274
        %v289 = vpop.permute.xlu0 %288
        %v291 = vmul.f32 %v263, %v277
        %v292 = vmul.f32 %v264, %v281
        %v293 = vmul.f32 %v265, %v285
        %v294 = vmul.f32 %v266, %v289
        %v299 = vperm.slane %v259, 0
        %v300 = vperm.slane %v260, 0
        %v301 = vperm.slane %v261, 0
        %v302 = vperm.slane %v262, 0
        %303 = vset.pattern.permute.xlu0 0
        %304 = vperm.xlu0 %303, %v299
        %v305 = vpop.permute.xlu0 %304
        %307 = vset.pattern.permute.xlu0 0
        %308 = vperm.xlu0 %307, %v300
        %v309 = vpop.permute.xlu0 %308
        %311 = vset.pattern.permute.xlu0 0
        %312 = vperm.xlu0 %311, %v301
        %v313 = vpop.permute.xlu0 %312
        %315 = vset.pattern.permute.xlu0 0
        %316 = vperm.xlu0 %315, %v302
        %v317 = vpop.permute.xlu0 %316
        %v319 = vadd.f32 %v291, %v305
        %v320 = vadd.f32 %v292, %v309
        %v321 = vadd.f32 %v293, %v313
        %v322 = vadd.f32 %v294, %v317
        %323 = vst [vmem:[%s207] sm:$0x3] %v319
        %324 = vst [vmem:[%s207 + $0x2] sm:$0x3] %v320
        %325 = vst [vmem:[%s207 + $0x4] sm:$0x3] %v321
        %326 = vst [vmem:[%s207 + $0x6] sm:$0x3] %v322
        %s327 = sand.u32 %s112, 1
        %s328 = scalar_lea.sflag [#allocation4], %s327
        %s329 = sand.u32 %s112, 1
        %s330 = smul.addr %s329, 8
        %s331 = scalar_lea.vmem [#allocation5], %s330
        // Predicated region
        $region37: #{tpu_custom_call.1} parent=31 // pred_check
          %p332 = pneg %p122
        $region38: #{tpu_custom_call.1} parent=31 // pred_check_branch
          %334 = sbr.rel (%p332) target = $region40
        $region39: #{tpu_custom_call.1} parent=31 // pred_region
          %336 = vsyncadd %s328, 0
          %s337 = smul.addr %s24, 4
          %s338 = sadd.s32 %s25, %s337
          %s339 = smul.addr %s338, 2
          %s340 = scalar_lea.hbm %s3, %s339
          %s341 = sshll.u32 %s331, 4
          %s342 = int_to_ptr.vmem [resolvable:$true] %s341
          %s343 = sshll.u32 %s340, 4
          %s344 = int_to_ptr.hbm [resolvable:$true] %s343
          %349 = dma.vmem_to_hbm [thread:$0]  %s342, 128, %s344, %s328, 32, 32, 2
        $region40: #{tpu_custom_call.1} parent=31 // pred_fallthru
          _
      $region32: #{tpu_custom_call.1} parent=5 // pred_fallthru
        _
      %p350 = scmp.le.s32.totalorder 2, %s15
      // Predicated region
      $region41: #{tpu_custom_call.1} parent=5 // pred_check
        %p351 = pneg %p350
      $region42: #{tpu_custom_call.1} parent=5 // pred_check_branch
        %353 = sbr.rel (%p351) target = $region44
      $region43: #{tpu_custom_call.1} parent=5 // pred_region
        %s354 = ssub.s32 %s15, 2
        // Predicated region
        $region45: #{tpu_custom_call.1} parent=43 // pred_check
          %p355 = pneg %p128
        $region46: #{tpu_custom_call.1} parent=43 // pred_check_branch
          %357 = sbr.rel (%p355) target = $region48
        $region47: #{tpu_custom_call.1} parent=43 // pred_region
          %s358 = sand.u32 %s113, 1
          %s359 = scalar_lea.sflag [#allocation4], %s358
          %s360 = sand.u32 %s113, 1
          %s361 = smul.addr %s360, 8
          %s362 = scalar_lea.vmem [#allocation5], %s361
          %364 = dma.done %s359, 128
        $region48: #{tpu_custom_call.1} parent=43 // pred_fallthru
          _
      $region44: #{tpu_custom_call.1} parent=5 // pred_fallthru
        _
    $region6: #{tpu_custom_call.1} parent=1 // loop_footer
      %s19 = sadd.s32 1, %s15
    $region7: #{tpu_custom_call.1} parent=1 // loop_footer_branch
      %14 = sbr.rel target = $region3
    $region8: #{tpu_custom_call.1} parent=1 // loop_exit
      _
    %365 = vsyncpa [#allocation3], 1
    %s366 = scalar_lea.sflag [#allocation3], 1
    %367 = vsyncpa %s366, 1
    %368 = vsyncpa [#allocation4], 1
    %s369 = scalar_lea.sflag [#allocation4], 1
    %370 = vsyncpa %s369, 1

</llo_original>
